<compile_context>
chip_gen: v5e
topology: v5e:2x2
jax: 0.10.0
libtpu: 0.0.40
codegen_flags: <defaults>
</compile_context>

<pallas_src>
import functools

import numpy as np
import jax
import jax.numpy as jnp
from jax.experimental import pallas as pl
from jax.experimental.pallas import tpu as pltpu


def _fused_loss_kernel(px_ref, tx_ref, py_ref, ty_ref, w_ref, out_ref,
                       *, beta, label_softmax, n_valid_rows):
    """Per-row-tile fused BCE+KLD for both SimCC components.

    Inputs (VMEM): pred_x/target_x (T, Wx), pred_y/target_y (T, Wy) raw logits /
    soft labels, weight (T, 1).  Output (VMEM): one full (1, 8, 128) hardware
    tile of partial sums: sublane 0 lanes [0..3] = [bce_x, kld_x, bce_y, kld_y]
    weighted sums for this tile, zeros elsewhere.
    """
    tile_n = px_ref.shape[0]
    w = w_ref[...].astype(jnp.float32)                                   # (T, 1)

    if n_valid_rows is None:
        valid = None                                                      # no ragged tile
    else:
        row_idx = (pl.program_id(0) * tile_n
                   + jax.lax.broadcasted_iota(jnp.int32, (tile_n, 1), 0))
        valid = row_idx < n_valid_rows                                    # (T, 1)

    def masked_rowsum(row_vec):
        # Row-level masking: out-of-bounds rows hold unspecified data, but any
        # inf/NaN they produce stays inside their own row's reductions and is
        # replaced by 0 here before reaching the scalar accumulators.
        prod = row_vec * w
        if valid is not None:
            prod = jnp.where(valid, prod, 0.0)
        return jnp.sum(prod)

    def component(pred, tgt):
        pred = pred.astype(jnp.float32)
        tgt = tgt.astype(jnp.float32)
        inv_width = 1.0 / pred.shape[-1]

        # ---- BCE in logits form (== torch BCE on sigmoid(pred) with log clamp -100):
        #   t*min(softplus(-x),100) + (1-t)*min(softplus(x),100)
        # = min(sp,100) + t*(min(sp_neg,100) - min(sp,100))
        sp = jnp.maximum(pred, 0.0) + jnp.log1p(jnp.exp(-jnp.abs(pred)))  # softplus(x)
        sp_neg = sp - pred                                                # softplus(-x)
        b0 = jnp.minimum(sp, 100.0)
        b1 = jnp.minimum(sp_neg, 100.0)
        bce_row = jnp.sum(b0 + tgt * (b1 - b0), axis=-1, keepdims=True)   # (T, 1)

        # ---- KLD (KLDiscretLoss.criterion on raw logits) ----
        z = pred * beta if beta != 1.0 else pred
        z = z - jnp.max(z, axis=-1, keepdims=True)
        log_sp = jnp.log(jnp.sum(jnp.exp(z), axis=-1, keepdims=True))     # (T, 1)

        if label_softmax:
            zt = tgt * beta if beta != 1.0 else tgt
            zt = zt - jnp.max(zt, axis=-1, keepdims=True)
            et = jnp.exp(zt)
            st = jnp.sum(et, axis=-1, keepdims=True)                      # (T, 1)
            labels = et * (1.0 / st)                                      # per-row divide
            # sum labels*(log_labels - log_pt)
            #   = sum labels*(zt - z) + log(sum e^z) - log(sum e^zt)
            kl_row = (jnp.sum(labels * (zt - z), axis=-1, keepdims=True)
                      + log_sp - jnp.log(st))
        else:
            # torch KLDivLoss: target*(log(target)-input), defined as 0 where target==0
            log_pt = z - log_sp
            xlogx = jnp.where(tgt > 0.0,
                              tgt * jnp.log(jnp.maximum(tgt, 1e-38)), 0.0)
            kl_row = jnp.sum(xlogx - tgt * log_pt, axis=-1, keepdims=True)

        kl_row = kl_row * inv_width                                       # mean over bins
        return masked_rowsum(bce_row), masked_rowsum(kl_row)

    bce_x, kld_x = component(px_ref[...], tx_ref[...])
    bce_y, kld_y = component(py_ref[...], ty_ref[...])

    # Full (8, 128) hardware-tile output (unmasked stores); 4 scalars in sublane 0.
    lane = jax.lax.broadcasted_iota(jnp.int32, (1, 8, 128), 2)
    sub = jax.lax.broadcasted_iota(jnp.int32, (1, 8, 128), 1)
    vals = jnp.where(lane == 0, bce_x,
           jnp.where(lane == 1, kld_x,
           jnp.where(lane == 2, bce_y,
           jnp.where(lane == 3, kld_y, 0.0))))
    out_ref[...] = jnp.where(sub == 0, vals, 0.0).astype(jnp.float32)


def _round_up(x, m):
    return ((x + m - 1) // m) * m


def _device_kind():
    try:
        return jax.devices()[0].device_kind.lower()
    except Exception:
        return ""


def bce_kld_combined_loss(pred, target, target_weight=None,
                          bce_weight=1.0, kld_weight=1.0,
                          beta=1.0, label_softmax=True,
                          tile_rows=None, cast_inputs_to_bf16=False):
    """JAX/Pallas equivalent of BCEKLDCombinedLoss.forward (returns scalar loss)."""
    pred_x, pred_y = pred
    target_x, target_y = target
    B, K, Wx = pred_x.shape
    Wy = pred_y.shape[-1]
    N = B * K

    if target_weight is None:
        target_weight = jnp.ones((B, K), jnp.float32)

    px = pred_x.reshape(N, Wx)
    tx = target_x.reshape(N, Wx)
    py = pred_y.reshape(N, Wy)
    ty = target_y.reshape(N, Wy)
    w = target_weight.reshape(N, 1).astype(jnp.float32)

    if cast_inputs_to_bf16:
        # Halves HBM traffic on bandwidth-bound chips; math stays f32 in-kernel.
        px, tx, py, ty = (a.astype(jnp.bfloat16) for a in (px, tx, py, ty))

    kind = _device_kind()
    is_v7 = "v7" in kind
    if tile_rows is None:
        tile_rows = 512 if is_v7 else 1024            # v7x: 64 MiB VMEM, 2 TCs/chip
    vmem_cap = (44 if is_v7 else 96) * (1 << 20)

    itemsize = jnp.dtype(px.dtype).itemsize
    align = 8

    def tile_vmem_bytes(t):
        # double-buffered input blocks + ~6 full-width f32 temporaries
        in_bytes = t * (2 * Wx + 2 * Wy) * itemsize + t * 4
        return 2 * 2 * in_bytes + 6 * t * max(Wx, Wy) * 4

    # Tile selection: multiple of 8 rows, never larger than the row count (so
    # the block shape itself always fits inside the array; ragged LAST block only).
    if N <= align:
        tile_n = N                                    # block == full row extent
    else:
        tile_n = min(_round_up(int(tile_rows), align), (N // align) * align)
        while tile_n > align and tile_vmem_bytes(tile_n) > int(0.6 * vmem_cap):
            tile_n = max(align, ((tile_n // 2) // align) * align)
        # Keep enough tiles to feed megacore / the double-buffered pipeline.
        min_tiles = 4 if is_v7 else 2
        if N >= min_tiles * align:
            per_tile = _round_up(-(-N // min_tiles), align)
            tile_n = min(tile_n, max(align, per_tile))
    num_tiles = -(-N // tile_n)

    vmem_limit = int(min(vmem_cap,
                         max(32 * (1 << 20), int(1.5 * tile_vmem_bytes(tile_n)))))

    # No jnp.pad of the inputs: ragged last tile (if any) is masked in-kernel.
    n_valid = None if num_tiles * tile_n == N else int(N)
    kernel = functools.partial(_fused_loss_kernel, beta=float(beta),
                               label_softmax=bool(label_softmax),
                               n_valid_rows=n_valid)

    partials = pl.pallas_call(
        kernel,
        grid=(num_tiles,),
        in_specs=[
            pl.BlockSpec((tile_n, Wx), lambda i: (i, 0)),
            pl.BlockSpec((tile_n, Wx), lambda i: (i, 0)),
            pl.BlockSpec((tile_n, Wy), lambda i: (i, 0)),
            pl.BlockSpec((tile_n, Wy), lambda i: (i, 0)),
            pl.BlockSpec((tile_n, 1), lambda i: (i, 0)),
        ],
        out_specs=pl.BlockSpec((1, 8, 128), lambda i: (i, 0, 0)),
        out_shape=jax.ShapeDtypeStruct((num_tiles, 8, 128), jnp.float32),
        compiler_params=pltpu.CompilerParams(
            dimension_semantics=("parallel",),        # no cross-step accumulator
            vmem_limit_bytes=vmem_limit),
    )(px, tx, py, ty, w)

    sums = jnp.sum(partials, axis=(0, 1))             # (128,)
    bce_sx, kld_sx, bce_sy, kld_sy = sums[0], sums[1], sums[2], sums[3]

    # BCELoss(use_target_weight=True, reduction='mean'): mean over (B, K, W)
    bce_loss = bce_sx / (N * Wx) + bce_sy / (N * Wy)
    # KLDiscretLoss: weighted row-mean KL summed over rows and both components, / K
    kld_loss = (kld_sx + kld_sy) / K
    # TODO(synk): original module host-prints BCE/KLD values via .item(); skipped here.
    return bce_weight * bce_loss + kld_weight * kld_loss


def _ref_loss(pred, target, target_weight, bce_weight=1.0, kld_weight=1.0,
              beta=1.0, label_softmax=True):
    """Pure-JAX reference mirroring the PyTorch semantics (for validation)."""
    def bce(pred_l, tgt, w):
        p = jax.nn.sigmoid(pred_l)
        lp = jnp.maximum(jnp.log(p), -100.0)
        l1p = jnp.maximum(jnp.log1p(-p), -100.0)
        el = -(tgt * lp + (1.0 - tgt) * l1p)
        return jnp.mean(el * w[:, :, None])

    def kld(pred_l, tgt, w):
        log_pt = jax.nn.log_softmax(pred_l * beta, axis=-1)
        labels = jax.nn.softmax(tgt * beta, axis=-1) if label_softmax else tgt
        kl = labels * (jnp.log(labels) - log_pt)
        return jnp.sum(jnp.mean(kl, axis=-1) * w)

    px, py = pred
    tx, ty = target
    K = px.shape[1]
    bce_loss = bce(px, tx, target_weight) + bce(py, ty, target_weight)
    kld_loss = (kld(px, tx, target_weight) + kld(py, ty, target_weight)) / K
    return bce_weight * bce_loss + kld_weight * kld_loss


if __name__ == "__main__":
    key = jax.random.PRNGKey(0)

    # Case 1: tiny exact-f32 path (rows divide the tile evenly, no masking).
    B, K, Wx, Wy = 2, 4, 16, 16
    k1, k2, k3, k4, k5 = jax.random.split(key, 5)
    pred_x = jax.random.normal(k1, (B, K, Wx), dtype=jnp.float32)
    pred_y = jax.random.normal(k2, (B, K, Wy), dtype=jnp.float32)
    target_x = jax.random.uniform(k3, (B, K, Wx), dtype=jnp.float32)
    target_y = jax.random.uniform(k4, (B, K, Wy), dtype=jnp.float32)
    target_weight = jax.random.uniform(k5, (B, K), dtype=jnp.float32)

    total = bce_kld_combined_loss((pred_x, pred_y), (target_x, target_y),
                                  target_weight)
    total = jax.block_until_ready(total)
    ref = _ref_loss((pred_x, pred_y), (target_x, target_y), target_weight)
    np.testing.assert_allclose(np.asarray(total), np.asarray(ref),
                               rtol=1e-5, atol=1e-5)

    # Case 2: ragged rows (N = 2*17 = 34, not a multiple of the tile) — exercises
    # the no-pad in-kernel masking path at strict f32 tolerance.
    B2, K2, Wx2, Wy2 = 2, 17, 48, 64
    j1, j2, j3, j4, j5 = jax.random.split(jax.random.PRNGKey(1), 5)
    px2 = jax.random.normal(j1, (B2, K2, Wx2), dtype=jnp.float32)
    py2 = jax.random.normal(j2, (B2, K2, Wy2), dtype=jnp.float32)
    tx2 = jax.random.uniform(j3, (B2, K2, Wx2), dtype=jnp.float32)
    ty2 = jax.random.uniform(j4, (B2, K2, Wy2), dtype=jnp.float32)
    tw2 = jax.random.uniform(j5, (B2, K2), dtype=jnp.float32)

    total2 = bce_kld_combined_loss((px2, py2), (tx2, ty2), tw2, tile_rows=16)
    total2 = jax.block_until_ready(total2)
    ref2 = _ref_loss((px2, py2), (tx2, ty2), tw2)
    np.testing.assert_allclose(np.asarray(total2), np.asarray(ref2),
                               rtol=1e-5, atol=1e-5)

    # Case 3: same shapes with bf16 input storage (bandwidth path) — loose tol.
    total3 = bce_kld_combined_loss((px2, py2), (tx2, ty2), tw2, tile_rows=16,
                                   cast_inputs_to_bf16=True)
    total3 = jax.block_until_ready(total3)
    np.testing.assert_allclose(np.asarray(total3), np.asarray(ref2),
                               rtol=3e-2, atol=3e-2)

    print("KERNEL_OK")
</pallas_src>

<mosaic_0001>
module attributes {stable_mosaic.version = 11 : i64} {
  func.func @_fused_loss_kernel(%arg0: i32, %arg1: memref<8x16xf32, #tpu.memory_space<vmem>>, %arg2: memref<8x16xf32, #tpu.memory_space<vmem>>, %arg3: memref<8x16xf32, #tpu.memory_space<vmem>>, %arg4: memref<8x16xf32, #tpu.memory_space<vmem>>, %arg5: memref<8x1xf32, #tpu.memory_space<vmem>>, %arg6: memref<1x8x128xf32, #tpu.memory_space<vmem>>) attributes {dimension_semantics = [#tpu.dimension_semantics<parallel>], iteration_bounds = array<i64: 1>, scalar_prefetch = 0 : i64, scratch_operands = 0 : i64, tpu.core_type = #tpu.core_type<tc>, window_params = [{transform_indices = @transform_0, window_bounds = array<i64: 8, 16>}, {transform_indices = @transform_1, window_bounds = array<i64: 8, 16>}, {transform_indices = @transform_2, window_bounds = array<i64: 8, 16>}, {transform_indices = @transform_3, window_bounds = array<i64: 8, 16>}, {transform_indices = @transform_4, window_bounds = array<i64: 8, 1>}, {transform_indices = @transform_5, window_bounds = array<i64: 1, 8, 128>}]} {
    %c0 = arith.constant 0 : index
    %c0_0 = arith.constant 0 : index
    %0 = vector.load %arg5[%c0, %c0_0] : memref<8x1xf32, #tpu.memory_space<vmem>>, vector<8x1xf32>
    %c0_1 = arith.constant 0 : index
    %c0_2 = arith.constant 0 : index
    %1 = vector.load %arg1[%c0_1, %c0_2] : memref<8x16xf32, #tpu.memory_space<vmem>>, vector<8x16xf32>
    %c0_3 = arith.constant 0 : index
    %c0_4 = arith.constant 0 : index
    %2 = vector.load %arg2[%c0_3, %c0_4] : memref<8x16xf32, #tpu.memory_space<vmem>>, vector<8x16xf32>
    %cst = arith.constant 0.000000e+00 : f32
    %3 = vector.broadcast %cst : f32 to vector<8x16xf32>
    %4 = arith.maximumf %1, %3 : vector<8x16xf32>
    %5 = math.absf %1 : vector<8x16xf32>
    %cst_5 = arith.constant 0.000000e+00 : f32
    %6 = vector.broadcast %cst_5 : f32 to vector<8x16xf32>
    %7 = arith.subf %6, %5 : vector<8x16xf32>
    %8 = math.exp %7 : vector<8x16xf32>
    %9 = math.log1p %8 : vector<8x16xf32>
    %10 = arith.addf %4, %9 : vector<8x16xf32>
    %11 = arith.subf %10, %1 : vector<8x16xf32>
    %cst_6 = arith.constant 1.000000e+02 : f32
    %12 = vector.broadcast %cst_6 : f32 to vector<8x16xf32>
    %13 = arith.minimumf %10, %12 : vector<8x16xf32>
    %cst_7 = arith.constant 1.000000e+02 : f32
    %14 = vector.broadcast %cst_7 : f32 to vector<8x16xf32>
    %15 = arith.minimumf %11, %14 : vector<8x16xf32>
    %16 = arith.subf %15, %13 : vector<8x16xf32>
    %17 = arith.mulf %2, %16 : vector<8x16xf32>
    %18 = arith.addf %13, %17 : vector<8x16xf32>
    %cst_8 = arith.constant dense<0.000000e+00> : vector<8xf32>
    %19 = vector.multi_reduction <add>, %18, %cst_8 [1] : vector<8x16xf32> to vector<8xf32>
    %20 = vector.shape_cast %19 : vector<8xf32> to vector<8x1xf32>
    %cst_9 = arith.constant dense<0xFF800000> : vector<8xf32>
    %21 = vector.multi_reduction <maximumf>, %1, %cst_9 [1] : vector<8x16xf32> to vector<8xf32>
    %22 = vector.shape_cast %21 : vector<8xf32> to vector<8x1xf32>
    %23 = vector.broadcast %22 : vector<8x1xf32> to vector<8x16xf32>
    %24 = arith.subf %1, %23 : vector<8x16xf32>
    %25 = math.exp %24 : vector<8x16xf32>
    %cst_10 = arith.constant dense<0.000000e+00> : vector<8xf32>
    %26 = vector.multi_reduction <add>, %25, %cst_10 [1] : vector<8x16xf32> to vector<8xf32>
    %27 = vector.shape_cast %26 : vector<8xf32> to vector<8x1xf32>
    %28 = math.log %27 : vector<8x1xf32>
    %cst_11 = arith.constant dense<0xFF800000> : vector<8xf32>
    %29 = vector.multi_reduction <maximumf>, %2, %cst_11 [1] : vector<8x16xf32> to vector<8xf32>
    %30 = vector.shape_cast %29 : vector<8xf32> to vector<8x1xf32>
    %31 = vector.broadcast %30 : vector<8x1xf32> to vector<8x16xf32>
    %32 = arith.subf %2, %31 : vector<8x16xf32>
    %33 = math.exp %32 : vector<8x16xf32>
    %cst_12 = arith.constant dense<0.000000e+00> : vector<8xf32>
    %34 = vector.multi_reduction <add>, %33, %cst_12 [1] : vector<8x16xf32> to vector<8xf32>
    %35 = vector.shape_cast %34 : vector<8xf32> to vector<8x1xf32>
    %cst_13 = arith.constant 1.000000e+00 : f32
    %36 = vector.broadcast %cst_13 : f32 to vector<8x1xf32>
    %37 = arith.divf %36, %35 : vector<8x1xf32>
    %38 = vector.broadcast %37 : vector<8x1xf32> to vector<8x16xf32>
    %39 = arith.mulf %33, %38 : vector<8x16xf32>
    %40 = arith.subf %32, %24 : vector<8x16xf32>
    %41 = arith.mulf %39, %40 : vector<8x16xf32>
    %cst_14 = arith.constant dense<0.000000e+00> : vector<8xf32>
    %42 = vector.multi_reduction <add>, %41, %cst_14 [1] : vector<8x16xf32> to vector<8xf32>
    %43 = vector.shape_cast %42 : vector<8xf32> to vector<8x1xf32>
    %44 = arith.addf %43, %28 : vector<8x1xf32>
    %45 = math.log %35 : vector<8x1xf32>
    %46 = arith.subf %44, %45 : vector<8x1xf32>
    %cst_15 = arith.constant 6.250000e-02 : f32
    %47 = vector.broadcast %cst_15 : f32 to vector<8x1xf32>
    %48 = arith.mulf %46, %47 : vector<8x1xf32>
    %49 = arith.mulf %20, %0 : vector<8x1xf32>
    %50 = vector.shape_cast %49 : vector<8x1xf32> to vector<1x8x1xf32>
    %cst_16 = arith.constant dense<0.000000e+00> : vector<1xf32>
    %51 = vector.multi_reduction <add>, %50, %cst_16 [1, 2] : vector<1x8x1xf32> to vector<1xf32>
    %52 = vector.shape_cast %51 : vector<1xf32> to vector<1x1x1xf32>
    %53 = vector.extract %52[0, 0, 0] : f32 from vector<1x1x1xf32>
    %54 = arith.mulf %48, %0 : vector<8x1xf32>
    %55 = vector.shape_cast %54 : vector<8x1xf32> to vector<1x8x1xf32>
    %cst_17 = arith.constant dense<0.000000e+00> : vector<1xf32>
    %56 = vector.multi_reduction <add>, %55, %cst_17 [1, 2] : vector<1x8x1xf32> to vector<1xf32>
    %57 = vector.shape_cast %56 : vector<1xf32> to vector<1x1x1xf32>
    %58 = vector.extract %57[0, 0, 0] : f32 from vector<1x1x1xf32>
    %c0_18 = arith.constant 0 : index
    %c0_19 = arith.constant 0 : index
    %59 = vector.load %arg3[%c0_18, %c0_19] : memref<8x16xf32, #tpu.memory_space<vmem>>, vector<8x16xf32>
    %c0_20 = arith.constant 0 : index
    %c0_21 = arith.constant 0 : index
    %60 = vector.load %arg4[%c0_20, %c0_21] : memref<8x16xf32, #tpu.memory_space<vmem>>, vector<8x16xf32>
    %cst_22 = arith.constant 0.000000e+00 : f32
    %61 = vector.broadcast %cst_22 : f32 to vector<8x16xf32>
    %62 = arith.maximumf %59, %61 : vector<8x16xf32>
    %63 = math.absf %59 : vector<8x16xf32>
    %cst_23 = arith.constant 0.000000e+00 : f32
    %64 = vector.broadcast %cst_23 : f32 to vector<8x16xf32>
    %65 = arith.subf %64, %63 : vector<8x16xf32>
    %66 = math.exp %65 : vector<8x16xf32>
    %67 = math.log1p %66 : vector<8x16xf32>
    %68 = arith.addf %62, %67 : vector<8x16xf32>
    %69 = arith.subf %68, %59 : vector<8x16xf32>
    %cst_24 = arith.constant 1.000000e+02 : f32
    %70 = vector.broadcast %cst_24 : f32 to vector<8x16xf32>
    %71 = arith.minimumf %68, %70 : vector<8x16xf32>
    %cst_25 = arith.constant 1.000000e+02 : f32
    %72 = vector.broadcast %cst_25 : f32 to vector<8x16xf32>
    %73 = arith.minimumf %69, %72 : vector<8x16xf32>
    %74 = arith.subf %73, %71 : vector<8x16xf32>
    %75 = arith.mulf %60, %74 : vector<8x16xf32>
    %76 = arith.addf %71, %75 : vector<8x16xf32>
    %cst_26 = arith.constant dense<0.000000e+00> : vector<8xf32>
    %77 = vector.multi_reduction <add>, %76, %cst_26 [1] : vector<8x16xf32> to vector<8xf32>
    %78 = vector.shape_cast %77 : vector<8xf32> to vector<8x1xf32>
    %cst_27 = arith.constant dense<0xFF800000> : vector<8xf32>
    %79 = vector.multi_reduction <maximumf>, %59, %cst_27 [1] : vector<8x16xf32> to vector<8xf32>
    %80 = vector.shape_cast %79 : vector<8xf32> to vector<8x1xf32>
    %81 = vector.broadcast %80 : vector<8x1xf32> to vector<8x16xf32>
    %82 = arith.subf %59, %81 : vector<8x16xf32>
    %83 = math.exp %82 : vector<8x16xf32>
    %cst_28 = arith.constant dense<0.000000e+00> : vector<8xf32>
    %84 = vector.multi_reduction <add>, %83, %cst_28 [1] : vector<8x16xf32> to vector<8xf32>
    %85 = vector.shape_cast %84 : vector<8xf32> to vector<8x1xf32>
    %86 = math.log %85 : vector<8x1xf32>
    %cst_29 = arith.constant dense<0xFF800000> : vector<8xf32>
    %87 = vector.multi_reduction <maximumf>, %60, %cst_29 [1] : vector<8x16xf32> to vector<8xf32>
    %88 = vector.shape_cast %87 : vector<8xf32> to vector<8x1xf32>
    %89 = vector.broadcast %88 : vector<8x1xf32> to vector<8x16xf32>
    %90 = arith.subf %60, %89 : vector<8x16xf32>
    %91 = math.exp %90 : vector<8x16xf32>
    %cst_30 = arith.constant dense<0.000000e+00> : vector<8xf32>
    %92 = vector.multi_reduction <add>, %91, %cst_30 [1] : vector<8x16xf32> to vector<8xf32>
    %93 = vector.shape_cast %92 : vector<8xf32> to vector<8x1xf32>
    %cst_31 = arith.constant 1.000000e+00 : f32
    %94 = vector.broadcast %cst_31 : f32 to vector<8x1xf32>
    %95 = arith.divf %94, %93 : vector<8x1xf32>
    %96 = vector.broadcast %95 : vector<8x1xf32> to vector<8x16xf32>
    %97 = arith.mulf %91, %96 : vector<8x16xf32>
    %98 = arith.subf %90, %82 : vector<8x16xf32>
    %99 = arith.mulf %97, %98 : vector<8x16xf32>
    %cst_32 = arith.constant dense<0.000000e+00> : vector<8xf32>
    %100 = vector.multi_reduction <add>, %99, %cst_32 [1] : vector<8x16xf32> to vector<8xf32>
    %101 = vector.shape_cast %100 : vector<8xf32> to vector<8x1xf32>
    %102 = arith.addf %101, %86 : vector<8x1xf32>
    %103 = math.log %93 : vector<8x1xf32>
    %104 = arith.subf %102, %103 : vector<8x1xf32>
    %cst_33 = arith.constant 6.250000e-02 : f32
    %105 = vector.broadcast %cst_33 : f32 to vector<8x1xf32>
    %106 = arith.mulf %104, %105 : vector<8x1xf32>
    %107 = arith.mulf %78, %0 : vector<8x1xf32>
    %108 = vector.shape_cast %107 : vector<8x1xf32> to vector<1x8x1xf32>
    %cst_34 = arith.constant dense<0.000000e+00> : vector<1xf32>
    %109 = vector.multi_reduction <add>, %108, %cst_34 [1, 2] : vector<1x8x1xf32> to vector<1xf32>
    %110 = vector.shape_cast %109 : vector<1xf32> to vector<1x1x1xf32>
    %111 = vector.extract %110[0, 0, 0] : f32 from vector<1x1x1xf32>
    %112 = arith.mulf %106, %0 : vector<8x1xf32>
    %113 = vector.shape_cast %112 : vector<8x1xf32> to vector<1x8x1xf32>
    %cst_35 = arith.constant dense<0.000000e+00> : vector<1xf32>
    %114 = vector.multi_reduction <add>, %113, %cst_35 [1, 2] : vector<1x8x1xf32> to vector<1xf32>
    %115 = vector.shape_cast %114 : vector<1xf32> to vector<1x1x1xf32>
    %116 = vector.extract %115[0, 0, 0] : f32 from vector<1x1x1xf32>
    %117 = tpu.iota {dimensions = array<i32: 2>} : vector<1x8x128xi32>
    %118 = tpu.iota {dimensions = array<i32: 1>} : vector<1x8x128xi32>
    %c0_i32 = arith.constant 0 : i32
    %119 = vector.broadcast %c0_i32 : i32 to vector<1x8x128xi32>
    %120 = arith.cmpi eq, %117, %119 : vector<1x8x128xi32>
    %c1_i32 = arith.constant 1 : i32
    %121 = vector.broadcast %c1_i32 : i32 to vector<1x8x128xi32>
    %122 = arith.cmpi eq, %117, %121 : vector<1x8x128xi32>
    %c2_i32 = arith.constant 2 : i32
    %123 = vector.broadcast %c2_i32 : i32 to vector<1x8x128xi32>
    %124 = arith.cmpi eq, %117, %123 : vector<1x8x128xi32>
    %c3_i32 = arith.constant 3 : i32
    %125 = vector.broadcast %c3_i32 : i32 to vector<1x8x128xi32>
    %126 = arith.cmpi eq, %117, %125 : vector<1x8x128xi32>
    %cst_36 = arith.constant 0.000000e+00 : f32
    %127 = vector.broadcast %116 : f32 to vector<1x8x128xf32>
    %128 = vector.broadcast %cst_36 : f32 to vector<1x8x128xf32>
    %129 = arith.select %126, %127, %128 : vector<1x8x128xi1>, vector<1x8x128xf32>
    %130 = vector.broadcast %111 : f32 to vector<1x8x128xf32>
    %131 = arith.select %124, %130, %129 : vector<1x8x128xi1>, vector<1x8x128xf32>
    %132 = vector.broadcast %58 : f32 to vector<1x8x128xf32>
    %133 = arith.select %122, %132, %131 : vector<1x8x128xi1>, vector<1x8x128xf32>
    %134 = vector.broadcast %53 : f32 to vector<1x8x128xf32>
    %135 = arith.select %120, %134, %133 : vector<1x8x128xi1>, vector<1x8x128xf32>
    %c0_i32_37 = arith.constant 0 : i32
    %136 = vector.broadcast %c0_i32_37 : i32 to vector<1x8x128xi32>
    %137 = arith.cmpi eq, %118, %136 : vector<1x8x128xi32>
    %cst_38 = arith.constant 0.000000e+00 : f32
    %138 = vector.broadcast %cst_38 : f32 to vector<1x8x128xf32>
    %139 = arith.select %137, %135, %138 : vector<1x8x128xi1>, vector<1x8x128xf32>
    %c0_39 = arith.constant 0 : index
    %c0_40 = arith.constant 0 : index
    %c0_41 = arith.constant 0 : index
    %140 = vector.load %arg6[%c0_39, %c0_40, %c0_41] : memref<1x8x128xf32, #tpu.memory_space<vmem>>, vector<1x8x128xf32>
    tpu.vector_store %arg6[%c0_39, %c0_40, %c0_41], %139 {strides = array<i32>} : memref<1x8x128xf32, #tpu.memory_space<vmem>>, vector<1x8x128xf32>,
    return
  }
  func.func @transform_0(%arg0: i32) -> (i32, i32) {
    %c0_i32 = arith.constant 0 : i32
    %c0_i32_0 = arith.constant 0 : i32
    return %arg0, %c0_i32 : i32, i32
  }
  func.func @transform_1(%arg0: i32) -> (i32, i32) {
    %c0_i32 = arith.constant 0 : i32
    %c0_i32_0 = arith.constant 0 : i32
    return %arg0, %c0_i32 : i32, i32
  }
  func.func @transform_2(%arg0: i32) -> (i32, i32) {
    %c0_i32 = arith.constant 0 : i32
    %c0_i32_0 = arith.constant 0 : i32
    return %arg0, %c0_i32 : i32, i32
  }
  func.func @transform_3(%arg0: i32) -> (i32, i32) {
    %c0_i32 = arith.constant 0 : i32
    %c0_i32_0 = arith.constant 0 : i32
    return %arg0, %c0_i32 : i32, i32
  }
  func.func @transform_4(%arg0: i32) -> (i32, i32) {
    %c0_i32 = arith.constant 0 : i32
    %c0_i32_0 = arith.constant 0 : i32
    return %arg0, %c0_i32 : i32, i32
  }
  func.func @transform_5(%arg0: i32) -> (i32, i32, i32) {
    %c0_i32 = arith.constant 0 : i32
    %c0_i32_0 = arith.constant 0 : i32
    %c0_i32_1 = arith.constant 0 : i32
    return %arg0, %c0_i32, %c0_i32_0 : i32, i32, i32
  }
}

</mosaic_0001>

<llo_original>
// kernel: tpu_custom_call.1
$region0: #{tpu_custom_call.1}
  #allocation0 [shape = 'u32[]', space=smem, size = 0x4, offset = 0x4, fixed_abs, tag = 'smem constant byte address 0x4 - core index']
  #allocation1 [shape = 'u32[72,128]{1,0:T(1,128)}', space=vmem, size = 0x9000, scoped, tag = 'internal scratch']
  %s0 = inlined_call_operand.vmem [shape: f32[8,16], index: 0, kind: input, shape index: {}]
  %s1 = inlined_call_operand.hbm [shape: f32[8,16], index: 1, kind: input, shape index: {}]
  %s2 = inlined_call_operand.hbm [shape: f32[8,16], index: 2, kind: input, shape index: {}]
  %s3 = inlined_call_operand.hbm [shape: f32[8,16], index: 3, kind: input, shape index: {}]
  %s4 = inlined_call_operand.vmem [shape: f32[8,1], index: 4, kind: input, shape index: {}]
  %s5 = inlined_call_operand.hbm [shape: f32[1,8,128], index: 5, kind: output, shape index: {}]
  %s6 = sld [smem:[#allocation0]]
  $region42: #{tpu_custom_call.1} parent=0
    _
  %s8 = ssub.s32 1, %s6
  %s9 = scalar_select 0, %s8, %s6
  $region1: #{tpu_custom_call.1} parent=0
    #allocation2 [shape = 'u8[4096]{0}', space=vmem, size = 0x1000, scoped, tag = 'input window, operand 1, single buffered']
    #allocation3 [shape = 's32[1]{0}', space=sflag, size = 0x4, scoped, tag = 'scoped memory for tpu_custom_call.1']
    #allocation4 [shape = 's32[1]{0}', space=sflag, size = 0x4, scoped, tag = 'scoped memory for tpu_custom_call.1']
    #allocation5 [shape = 'u8[4096]{0}', space=vmem, size = 0x1000, scoped, tag = 'input window, operand 2, single buffered']
    #allocation6 [shape = 's32[1]{0}', space=sflag, size = 0x4, scoped, tag = 'scoped memory for tpu_custom_call.1']
    #allocation7 [shape = 'u8[4096]{0}', space=vmem, size = 0x1000, scoped, tag = 'input window, operand 3, single buffered']
    #allocation8 [shape = 'u8[4096]{0}', space=vmem, size = 0x1000, scoped, tag = 'output window, operand 0, single buffered']
    %10 = vsyncpa [#allocation3], 0
    %11 = vsyncpa [#allocation6], 0
    %12 = vsyncpa [#allocation4], 0
    // Predicated region
    $region2: #{tpu_custom_call.1} parent=1 // pred_check
      _
    $region3: #{tpu_custom_call.1} parent=1 // pred_check_branch
      %14 = sbr.rel (0) target = $region5
    $region4: #{tpu_custom_call.1} parent=1 // pred_region
      _
    $region5: #{tpu_custom_call.1} parent=1 // pred_fallthru
      _
    // Predicated region
    $region6: #{tpu_custom_call.1} parent=1 // pred_check
      _
    $region7: #{tpu_custom_call.1} parent=1 // pred_check_branch
      %16 = sbr.rel (0) target = $region9
    $region8: #{tpu_custom_call.1} parent=1 // pred_region
      %18 = vsyncadd [#allocation3], 0
      %s20 = sshll.u32 %s1, 4
      %s21 = int_to_ptr.hbm [resolvable:$true] %s20
      %s22 = sshll.u32 [#allocation2], 4
      %s23 = int_to_ptr.vmem [resolvable:$true] %s22
      %25 = dma.hbm_to_vmem [thread:$0]  %s21, 128, %s23, [#allocation3]
    $region9: #{tpu_custom_call.1} parent=1 // pred_fallthru
      _
    // Predicated region
    $region10: #{tpu_custom_call.1} parent=1 // pred_check
      _
    $region11: #{tpu_custom_call.1} parent=1 // pred_check_branch
      %27 = sbr.rel (0) target = $region13
    $region12: #{tpu_custom_call.1} parent=1 // pred_region
      %29 = vsyncadd [#allocation6], 0
      %s31 = sshll.u32 %s2, 4
      %s32 = int_to_ptr.hbm [resolvable:$true] %s31
      %s33 = sshll.u32 [#allocation5], 4
      %s34 = int_to_ptr.vmem [resolvable:$true] %s33
      %36 = dma.hbm_to_vmem [thread:$0]  %s32, 128, %s34, [#allocation6]
    $region13: #{tpu_custom_call.1} parent=1 // pred_fallthru
      _
    // Predicated region
    $region14: #{tpu_custom_call.1} parent=1 // pred_check
      _
    $region15: #{tpu_custom_call.1} parent=1 // pred_check_branch
      %38 = sbr.rel (0) target = $region17
    $region16: #{tpu_custom_call.1} parent=1 // pred_region
      %40 = vsyncadd [#allocation6], 0
      %s42 = sshll.u32 %s3, 4
      %s43 = int_to_ptr.hbm [resolvable:$true] %s42
      %s44 = sshll.u32 [#allocation7], 4
      %s45 = int_to_ptr.vmem [resolvable:$true] %s44
      %47 = dma.hbm_to_vmem [thread:$0]  %s43, 128, %s45, [#allocation6]
    $region17: #{tpu_custom_call.1} parent=1 // pred_fallthru
      _
    // Predicated region
    $region18: #{tpu_custom_call.1} parent=1 // pred_check
      _
    $region19: #{tpu_custom_call.1} parent=1 // pred_check_branch
      %49 = sbr.rel (0) target = $region21
    $region20: #{tpu_custom_call.1} parent=1 // pred_region
      _
    $region21: #{tpu_custom_call.1} parent=1 // pred_fallthru
      _
    // Predicated region
    $region22: #{tpu_custom_call.1} parent=1 // pred_check
      _
    $region23: #{tpu_custom_call.1} parent=1 // pred_check_branch
      %51 = sbr.rel (0) target = $region25
    $region24: #{tpu_custom_call.1} parent=1 // pred_region
      %53 = dma.done [#allocation3], 128
    $region25: #{tpu_custom_call.1} parent=1 // pred_fallthru
      _
    // Predicated region
    $region26: #{tpu_custom_call.1} parent=1 // pred_check
      _
    $region27: #{tpu_custom_call.1} parent=1 // pred_check_branch
      %55 = sbr.rel (0) target = $region29
    $region28: #{tpu_custom_call.1} parent=1 // pred_region
      %57 = dma.done [#allocation6], 128
    $region29: #{tpu_custom_call.1} parent=1 // pred_fallthru
      _
    // Predicated region
    $region30: #{tpu_custom_call.1} parent=1 // pred_check
      _
    $region31: #{tpu_custom_call.1} parent=1 // pred_check_branch
      %59 = sbr.rel (0) target = $region33
    $region32: #{tpu_custom_call.1} parent=1 // pred_region
      %61 = dma.done [#allocation6], 128
    $region33: #{tpu_custom_call.1} parent=1 // pred_fallthru
      _
    %v62 = vld [vmem:[%s4] sm:$0xff]
    %v63 = vld [vmem:[%s0] sm:$0xff]
    %v64 = vld [vmem:[#allocation2] sm:$0xff]
    %v65 = vmax.f32 %v63, 0.0
    %v66 = vand.u32 2147483647, %v63
    %v67 = vsub.f32 0.0, %v66
    %v68 = vmul.f32 %v67, 1.442695
    %v69 = vpow.pop %v68
    %v70 = vadd.f32 %v69, 1.0
    %v71 = vlog2.pop %v70
    %v72 = vmul.f32 %v71, 0.6931472
    %v73 = vmul.f32 -0.5, %v69
    %v74 = vadd.f32 %v73, 1.0
    %v75 = vmul.f32 %v74, %v69
    %v76 = vand.u32 2147483647, %v69
    %vm77 = vcmp.lt.f32.partialorder %v76, 0.0004427343
    %v78 = vsel %vm77, %v75, %v72
    %v79 = vadd.f32 %v65, %v78
    %v80 = vsub.f32 %v79, %v63
    %v81 = vmin.f32 %v79, 100.0
    %v82 = vmin.f32 %v80, 100.0
    %v83 = vsub.f32 %v82, %v81
    %v84 = vmul.f32 %v64, %v83
    %v85 = vadd.f32 %v81, %v84
    %vm86 = vcmask 130048
    %v87 = vsel %vm86, %v85, 0.0
    %88 = vadd.xlane.f32.xlu0 %v87
    %v89 = vpop.xlane.xlu0 %88
    %v90 = vsel %vm86, %v63, -inf
    %91 = vmax.xlane.f32.xlu0 %v90
    %v92 = vpop.xlane.xlu0 %91
    %v93 = vsub.f32 %v63, %v92
    %v94 = vmul.f32 %v93, 1.442695
    %v95 = vpow.pop %v94
    %v96 = vsel %vm86, %v95, 0.0
    %97 = vadd.xlane.f32.xlu0 %v96
    %v98 = vpop.xlane.xlu0 %97
    %v99 = vlog2.pop %v98
    %v100 = vmul.f32 %v99, 0.6931472
    %v101 = vsel %vm86, %v64, -inf
    %102 = vmax.xlane.f32.xlu0 %v101
    %v103 = vpop.xlane.xlu0 %102
    %v104 = vsub.f32 %v64, %v103
    %v105 = vmul.f32 %v104, 1.442695
    %v106 = vpow.pop %v105
    %v107 = vsel %vm86, %v106, 0.0
    %108 = vadd.xlane.f32.xlu0 %v107
    %v109 = vpop.xlane.xlu0 %108
    %v110 = vrcp.pop %v109
    %v111 = vmul.f32 %v109, %v110
    %v112 = vsub.f32 1.0, %v111
    %v113 = vmul.f32 %v110, %v112
    %v114 = vadd.f32 %v110, %v113
    %vm115 = vweird.f32 %v109
    %vm116 = vweird.f32 %v110
    %vm117 = vmor %vm115, %vm116
    %v118 = vsel %vm117, %v110, %v114
    %v119 = vand.u32 2147483647, %v109
    %vm120 = vcmp.eq.f32.partialorder %v119, 8.507059e+37
    %v121 = vand.u32 %v109, 2147483648
    %v122 = vor.u32 1.1754944e-38, %v121
    %v123 = vsel %vm120, %v122, %v118
    %v124 = vmul.f32 1.0, %v123
    %v125 = vmul.f32 %v106, %v124
    %v126 = vsub.f32 %v104, %v93
    %v127 = vmul.f32 %v125, %v126
    %v128 = vsel %vm86, %v127, 0.0
    %129 = vadd.xlane.f32.xlu0 %v128
    %v130 = vpop.xlane.xlu0 %129
    %v131 = vadd.f32 %v130, %v100
    %v132 = vlog2.pop %v109
    %v133 = vmul.f32 %v132, 0.6931472
    %v134 = vsub.f32 %v131, %v133
    %v135 = vmul.f32 %v134, 0.0625
    %v136 = vmul.f32 %v89, %v62
    %vm137 = vcmask 7168
    %v138 = vsel %vm137, %v136, 0.0
    %139 = vadd.xlane.f32.xlu0 %v138
    %v140 = vpop.xlane.xlu0 %139
    %v141 = vrot.slane %v140, 4
    %v142 = vadd.f32 %v140, %v141
    %v143 = vrot.slane %v142, 2
    %v144 = vadd.f32 %v142, %v143
    %v145 = vrot.slane %v144, 1
    %v146 = vadd.f32 %v144, %v145
    %s147 = vtos %v146
    %v148 = vmul.f32 %v135, %v62
    %v149 = vsel %vm137, %v148, 0.0
    %150 = vadd.xlane.f32.xlu0 %v149
    %v151 = vpop.xlane.xlu0 %150
    %v152 = vrot.slane %v151, 4
    %v153 = vadd.f32 %v151, %v152
    %v154 = vrot.slane %v153, 2
    %v155 = vadd.f32 %v153, %v154
    %v156 = vrot.slane %v155, 1
    %v157 = vadd.f32 %v155, %v156
    %s158 = vtos %v157
    %v159 = vld [vmem:[#allocation5] sm:$0xff]
    %v160 = vld [vmem:[#allocation7] sm:$0xff]
    %v161 = vmax.f32 %v159, 0.0
    %v162 = vand.u32 2147483647, %v159
    %v163 = vsub.f32 0.0, %v162
    %v164 = vmul.f32 %v163, 1.442695
    %v165 = vpow.pop %v164
    %v166 = vadd.f32 %v165, 1.0
    %v167 = vlog2.pop %v166
    %v168 = vmul.f32 %v167, 0.6931472
    %v169 = vmul.f32 -0.5, %v165
    %v170 = vadd.f32 %v169, 1.0
    %v171 = vmul.f32 %v170, %v165
    %v172 = vand.u32 2147483647, %v165
    %vm173 = vcmp.lt.f32.partialorder %v172, 0.0004427343
    %v174 = vsel %vm173, %v171, %v168
    %v175 = vadd.f32 %v161, %v174
    %v176 = vsub.f32 %v175, %v159
    %v177 = vmin.f32 %v175, 100.0
    %v178 = vmin.f32 %v176, 100.0
    %v179 = vsub.f32 %v178, %v177
    %v180 = vmul.f32 %v160, %v179
    %v181 = vadd.f32 %v177, %v180
    %v182 = vsel %vm86, %v181, 0.0
    %183 = vadd.xlane.f32.xlu0 %v182
    %v184 = vpop.xlane.xlu0 %183
    %v185 = vsel %vm86, %v159, -inf
    %186 = vmax.xlane.f32.xlu0 %v185
    %v187 = vpop.xlane.xlu0 %186
    %v188 = vsub.f32 %v159, %v187
    %v189 = vmul.f32 %v188, 1.442695
    %v190 = vpow.pop %v189
    %v191 = vsel %vm86, %v190, 0.0
    %192 = vadd.xlane.f32.xlu0 %v191
    %v193 = vpop.xlane.xlu0 %192
    %v194 = vlog2.pop %v193
    %v195 = vmul.f32 %v194, 0.6931472
    %v196 = vsel %vm86, %v160, -inf
    %197 = vmax.xlane.f32.xlu0 %v196
    %v198 = vpop.xlane.xlu0 %197
    %v199 = vsub.f32 %v160, %v198
    %v200 = vmul.f32 %v199, 1.442695
    %v201 = vpow.pop %v200
    %v202 = vsel %vm86, %v201, 0.0
    %203 = vadd.xlane.f32.xlu0 %v202
    %v204 = vpop.xlane.xlu0 %203
    %v205 = vrcp.pop %v204
    %v206 = vmul.f32 %v204, %v205
    %v207 = vsub.f32 1.0, %v206
    %v208 = vmul.f32 %v205, %v207
    %v209 = vadd.f32 %v205, %v208
    %vm210 = vweird.f32 %v204
    %vm211 = vweird.f32 %v205
    %vm212 = vmor %vm210, %vm211
    %v213 = vsel %vm212, %v205, %v209
    %v214 = vand.u32 2147483647, %v204
    %vm215 = vcmp.eq.f32.partialorder %v214, 8.507059e+37
    %v216 = vand.u32 %v204, 2147483648
    %v217 = vor.u32 1.1754944e-38, %v216
    %v218 = vsel %vm215, %v217, %v213
    %v219 = vmul.f32 1.0, %v218
    %v220 = vmul.f32 %v201, %v219
    %v221 = vsub.f32 %v199, %v188
    %v222 = vmul.f32 %v220, %v221
    %v223 = vsel %vm86, %v222, 0.0
    %224 = vadd.xlane.f32.xlu0 %v223
    %v225 = vpop.xlane.xlu0 %224
    %v226 = vadd.f32 %v225, %v195
    %v227 = vlog2.pop %v204
    %v228 = vmul.f32 %v227, 0.6931472
    %v229 = vsub.f32 %v226, %v228
    %v230 = vmul.f32 %v229, 0.0625
    %v231 = vmul.f32 %v184, %v62
    %v232 = vsel %vm137, %v231, 0.0
    %233 = vadd.xlane.f32.xlu0 %v232
    %v234 = vpop.xlane.xlu0 %233
    %v235 = vrot.slane %v234, 4
    %v236 = vadd.f32 %v234, %v235
    %v237 = vrot.slane %v236, 2
    %v238 = vadd.f32 %v236, %v237
    %v239 = vrot.slane %v238, 1
    %v240 = vadd.f32 %v238, %v239
    %s241 = vtos %v240
    %v242 = vmul.f32 %v230, %v62
    %v243 = vsel %vm137, %v242, 0.0
    %244 = vadd.xlane.f32.xlu0 %v243
    %v245 = vpop.xlane.xlu0 %244
    %v246 = vrot.slane %v245, 4
    %v247 = vadd.f32 %v245, %v246
    %v248 = vrot.slane %v247, 2
    %v249 = vadd.f32 %v247, %v248
    %v250 = vrot.slane %v249, 1
    %v251 = vadd.f32 %v249, %v250
    %s252 = vtos %v251
    %v253 = vlaneseq
    %v254 = vand.u32 %v253, 127
    %v255 = vlaneseq
    %v256 = vshrl.u32 %v255, 7
    %vm257 = vcmp.eq.s32.totalorder %v254, 0
    %vm258 = vcmp.eq.s32.totalorder %v254, 1
    %vm259 = vcmp.eq.s32.totalorder %v254, 2
    %vm260 = vcmp.eq.s32.totalorder %v254, 3
    %v261 = vstv %s252
    %v262 = vsel %vm260, %v261, 0.0
    %v263 = vstv %s241
    %v264 = vsel %vm259, %v263, %v262
    %v265 = vstv %s158
    %v266 = vsel %vm258, %v265, %v264
    %v267 = vstv %s147
    %v268 = vsel %vm257, %v267, %v266
    %vm269 = vcmp.eq.s32.totalorder %v256, 0
    %v270 = vsel %vm269, %v268, 0.0
    %271 = vst [vmem:[#allocation8] sm:$0xff] %v270
    // Predicated region
    $region34: #{tpu_custom_call.1} parent=1 // pred_check
      _
    $region35: #{tpu_custom_call.1} parent=1 // pred_check_branch
      %273 = sbr.rel (0) target = $region37
    $region36: #{tpu_custom_call.1} parent=1 // pred_region
      %275 = vsyncadd [#allocation4], 0
      %s277 = sshll.u32 [#allocation8], 4
      %s278 = int_to_ptr.vmem [resolvable:$true] %s277
      %s279 = sshll.u32 %s5, 4
      %s280 = int_to_ptr.hbm [resolvable:$true] %s279
      %282 = dma.vmem_to_hbm [thread:$0]  %s278, 128, %s280, [#allocation4]
    $region37: #{tpu_custom_call.1} parent=1 // pred_fallthru
      _
    // Predicated region
    $region38: #{tpu_custom_call.1} parent=1 // pred_check
      _
    $region39: #{tpu_custom_call.1} parent=1 // pred_check_branch
      %284 = sbr.rel (0) target = $region41
    $region40: #{tpu_custom_call.1} parent=1 // pred_region
      %286 = dma.done [#allocation4], 128
    $region41: #{tpu_custom_call.1} parent=1 // pred_fallthru
      _
    %287 = vsyncpa [#allocation3], 1
    %288 = vsyncpa [#allocation6], 1
    %289 = vsyncpa [#allocation4], 1

</llo_original>
